<compile_context>
chip_gen: v6e
topology: v6e:2x2x1
jax: 0.10.0
libtpu: 0.0.40
codegen_flags: <defaults>
</compile_context>

<pallas_src>
import math

import jax
import jax.numpy as jnp
from jax.experimental import pallas as pl
from jax.experimental.pallas import tpu as pltpu

EPS = 1e-8          # matches the PyTorch module's hardcoded self.eps
LANES = 128         # TPU lane width
STREAM_CHUNK = 512  # lanes per streaming reduction chunk


def _make_rmsnorm_kernel(hidden_true, hidden_padded):
    """Build a kernel closed over the true hidden size (for the 1/H factor)."""
    inv_h = 1.0 / float(hidden_true)

    # Stream over the lane axis in 512-lane chunks when possible so a full
    # f32 copy of the tile is never materialized (keeps v7x's 64 MiB VMEM
    # free for bigger double-buffered DMA blocks).
    if hidden_padded > STREAM_CHUNK and hidden_padded % STREAM_CHUNK == 0:
        chunk = STREAM_CHUNK
    else:
        chunk = hidden_padded
    n_chunks = hidden_padded // chunk

    def kernel(x_ref, o_ref):
        rows = x_ref.shape[0]
        # Sum of squares over hidden in f32 (zero-padded lanes contribute 0).
        acc = jnp.zeros((rows, 1), jnp.float32)
        for c in range(n_chunks):  # static trip count -> straight-line code
            xc = x_ref[:, c * chunk:(c + 1) * chunk].astype(jnp.float32)
            acc = acc + jnp.sum(xc * xc, axis=-1, keepdims=True)
        inv = jax.lax.rsqrt(acc * inv_h + EPS)  # EUP rsqrt, f32
        # Final scale in f32 (VALU slack makes it free), cast only on store.
        for c in range(n_chunks):
            xc = x_ref[:, c * chunk:(c + 1) * chunk].astype(jnp.float32)
            o_ref[:, c * chunk:(c + 1) * chunk] = (xc * inv).astype(o_ref.dtype)

    return kernel, chunk


def _round_down(v, m):
    return max(m, (v // m) * m)


def _vmem_capacity_bytes():
    """Physical VMEM per TensorCore, with a generation-aware fallback."""
    try:
        return int(pltpu.get_tpu_info().vmem_capacity_bytes)
    except Exception:
        try:
            kind = jax.devices()[0].device_kind.lower()
        except Exception:
            kind = ""
        # v7x has 64 MiB per TensorCore; v5e/v6e have 128 MiB.
        return (64 << 20) if "v7" in kind else (128 << 20)


def _pick_row_tile(rows, hidden_padded, itemsize, chunk):
    """Row tile sized by bytes, with enough grid depth for DMA overlap."""
    packing = 8 * max(1, 4 // itemsize)          # f32 -> 8, bf16 -> 16, int8 -> 32
    rows_padded = pl.cdiv(rows, packing) * packing

    vmem_bytes = _vmem_capacity_bytes()
    tile_budget = (vmem_bytes * 3) // 5          # generous Mosaic headroom

    row_block_bytes = hidden_padded * itemsize
    # Double-buffered input + output tiles plus two chunk-sized f32 temps/row.
    per_row_vmem = 4 * row_block_bytes + 2 * chunk * 4 + 16

    # (1) VMEM-feasible rows per block.
    t_vmem = max(1, tile_budget // per_row_vmem)
    # (2) Byte target: ~8 MiB of input per block on 128 MiB parts, ~4 MiB on
    #     64 MiB v7x -- keeps the ~0.35 us/step overhead well under 1%.
    target_bytes = (8 << 20) if vmem_bytes > (64 << 20) else (4 << 20)
    t_target = max(1, target_bytes // max(row_block_bytes, 1))

    tile = _round_down(min(t_vmem, t_target, rows_padded), packing)

    # (3) Keep the grid >= 8 steps (>= 4 per TensorCore on v7x) when rows
    #     allow, but never shrink blocks below ~1 MiB of input.
    depth = 8
    if rows_padded >= depth * packing:
        depth_tile = _round_down(rows_padded // depth, packing)
        min_tile = _round_down(
            max(packing, -(-(1 << 20) // max(row_block_bytes, 1))), packing)
        if depth_tile >= min_tile:
            tile = min(tile, depth_tile)

    tile = min(max(tile, packing), rows_padded)
    return tile, per_row_vmem, vmem_bytes


def rmsnorm(x):
    """RMSNorm over the last axis of x (any leading shape), no learnable weight."""
    orig_shape = x.shape
    hidden = orig_shape[-1]
    rows = int(math.prod(orig_shape[:-1]))
    x2 = x.reshape(rows, hidden)

    # Lane-dense last dim: zero-pad hidden up to a multiple of 128. The kernel
    # normalizes by the true hidden size, so padding is statistically inert;
    # padded output columns are sliced off below. No-op for hidden % 128 == 0.
    hidden_padded = pl.cdiv(hidden, LANES) * LANES
    if hidden_padded != hidden:
        x2 = jnp.pad(x2, ((0, 0), (0, hidden_padded - hidden)))

    kernel, chunk = _make_rmsnorm_kernel(hidden, hidden_padded)
    itemsize = jnp.dtype(x.dtype).itemsize
    row_tile, per_row_vmem, vmem_bytes = _pick_row_tile(
        rows, hidden_padded, itemsize, chunk)

    grid = (pl.cdiv(rows, row_tile),)            # partial tail block is masked

    # Scoped VMEM: cover the double-buffered tiles + temps with headroom, but
    # stay comfortably below physical VMEM (~0.85x; matters on v7x's 64 MiB).
    needed = row_tile * per_row_vmem + (8 << 20)
    vmem_limit = int(min((vmem_bytes * 17) // 20, max(needed, 32 << 20)))

    out = pl.pallas_call(
        kernel,
        out_shape=jax.ShapeDtypeStruct((rows, hidden_padded), x.dtype),
        grid_spec=pl.GridSpec(
            grid=grid,
            in_specs=[pl.BlockSpec((row_tile, hidden_padded), lambda i: (i, 0))],
            out_specs=pl.BlockSpec((row_tile, hidden_padded), lambda i: (i, 0)),
        ),
        compiler_params=pltpu.CompilerParams(
            dimension_semantics=("parallel",),   # rows shard across v7x's 2 TCs
            vmem_limit_bytes=vmem_limit,
        ),
    )(x2)

    if hidden_padded != hidden:
        out = out[:, :hidden]
    # NOTE: if this norm is followed by a gamma scale / residual add / cast in
    # the surrounding graph, fuse them into the kernel body above -- each
    # avoided elementwise pass saves a full HBM read+write of the tensor.
    return out.reshape(orig_shape)


if __name__ == "__main__":
    key = jax.random.PRNGKey(0)
    batch, seq, hidden = 2, 8, 32
    x = jax.random.normal(key, (batch, seq, hidden), dtype=jnp.float32)

    y = jax.block_until_ready(rmsnorm(x))

    # Reference check (pure JAX, same math as the PyTorch module).
    ref = x * jax.lax.rsqrt(jnp.mean(x * x, axis=-1, keepdims=True) + EPS)
    assert jnp.allclose(y, ref, atol=1e-5, rtol=1e-5), "mismatch vs reference"

    print("KERNEL_OK")
</pallas_src>

<mosaic_0001>
module attributes {stable_mosaic.version = 11 : i64} {
  func.func @kernel(%arg0: i32, %arg1: memref<16x128xf32, #tpu.memory_space<vmem>>, %arg2: memref<16x128xf32, #tpu.memory_space<vmem>>) attributes {dimension_semantics = [#tpu.dimension_semantics<parallel>], iteration_bounds = array<i64: 1>, scalar_prefetch = 0 : i64, scratch_operands = 0 : i64, tpu.core_type = #tpu.core_type<tc>, window_params = [{transform_indices = @transform_0, window_bounds = array<i64: 16, 128>}, {transform_indices = @transform_1, window_bounds = array<i64: 16, 128>}]} {
    %cst = arith.constant 0.000000e+00 : f32
    %0 = vector.broadcast %cst : f32 to vector<16x1xf32>
    %c0 = arith.constant 0 : index
    %c0_0 = arith.constant 0 : index
    %1 = vector.load %arg1[%c0, %c0_0] : memref<16x128xf32, #tpu.memory_space<vmem>>, vector<16x128xf32>
    %2 = arith.mulf %1, %1 : vector<16x128xf32>
    %cst_1 = arith.constant dense<0.000000e+00> : vector<16xf32>
    %3 = vector.multi_reduction <add>, %2, %cst_1 [1] : vector<16x128xf32> to vector<16xf32>
    %4 = vector.shape_cast %3 : vector<16xf32> to vector<16x1xf32>
    %5 = arith.addf %0, %4 : vector<16x1xf32>
    %cst_2 = arith.constant 3.125000e-02 : f32
    %6 = vector.broadcast %cst_2 : f32 to vector<16x1xf32>
    %7 = arith.mulf %5, %6 : vector<16x1xf32>
    %cst_3 = arith.constant 9.99999993E-9 : f32
    %8 = vector.broadcast %cst_3 : f32 to vector<16x1xf32>
    %9 = arith.addf %7, %8 : vector<16x1xf32>
    %10 = math.rsqrt %9 : vector<16x1xf32>
    %c0_4 = arith.constant 0 : index
    %c0_5 = arith.constant 0 : index
    %11 = vector.load %arg1[%c0_4, %c0_5] : memref<16x128xf32, #tpu.memory_space<vmem>>, vector<16x128xf32>
    %12 = vector.broadcast %10 : vector<16x1xf32> to vector<16x128xf32>
    %13 = arith.mulf %11, %12 : vector<16x128xf32>
    %c0_6 = arith.constant 0 : index
    %c0_7 = arith.constant 0 : index
    %14 = vector.load %arg2[%c0_6, %c0_7] : memref<16x128xf32, #tpu.memory_space<vmem>>, vector<16x128xf32>
    tpu.vector_store %arg2[%c0_6, %c0_7], %13 {strides = array<i32>} : memref<16x128xf32, #tpu.memory_space<vmem>>, vector<16x128xf32>,
    return
  }
  func.func @transform_0(%arg0: i32) -> (i32, i32) {
    %c0_i32 = arith.constant 0 : i32
    %c0_i32_0 = arith.constant 0 : i32
    return %arg0, %c0_i32 : i32, i32
  }
  func.func @transform_1(%arg0: i32) -> (i32, i32) {
    %c0_i32 = arith.constant 0 : i32
    %c0_i32_0 = arith.constant 0 : i32
    return %arg0, %c0_i32 : i32, i32
  }
}

</mosaic_0001>

<llo_original>
// kernel: tpu_custom_call.1
$region0: #{tpu_custom_call.1}
  #allocation0 [shape = 'u32[]', space=smem, size = 0x4, offset = 0x4, fixed_abs, tag = 'smem constant byte address 0x4 - core index']
  #allocation1 [shape = 'u32[144,128]{1,0:T(1,128)}', space=vmem, size = 0x12000, scoped, tag = 'internal scratch']
  %s0 = inlined_call_operand.hbm [shape: f32[16,128], index: 0, kind: input, shape index: {}]
  %s1 = inlined_call_operand.hbm [shape: f32[16,128], index: 1, kind: output, shape index: {}]
  %s2 = sld [smem:[#allocation0]]
  $region18: #{tpu_custom_call.1} parent=0
    _
  %s4 = ssub.s32 1, %s2
  %s5 = scalar_select 0, %s4, %s2
  $region1: #{tpu_custom_call.1} parent=0
    #allocation2 [shape = 'u8[8192]{0}', space=vmem, size = 0x2000, scoped, tag = 'input window, operand 0, single buffered']
    #allocation3 [shape = 's32[1]{0}', space=sflag, size = 0x4, scoped, tag = 'scoped memory for tpu_custom_call.1']
    #allocation4 [shape = 's32[1]{0}', space=sflag, size = 0x4, scoped, tag = 'scoped memory for tpu_custom_call.1']
    #allocation5 [shape = 'u8[8192]{0}', space=vmem, size = 0x2000, scoped, tag = 'output window, operand 0, single buffered']
    %6 = vsyncpa [#allocation3], 0
    %7 = vsyncpa [#allocation4], 0
    // Predicated region
    $region2: #{tpu_custom_call.1} parent=1 // pred_check
      _
    $region3: #{tpu_custom_call.1} parent=1 // pred_check_branch
      %9 = sbr.rel (0) target = $region5
    $region4: #{tpu_custom_call.1} parent=1 // pred_region
      %s11 = ssub.s32 256, 256
      %12 = vsyncadd [#allocation3], %s11
      %s13 = sshll.u32 [#allocation2], 4
      %s14 = int_to_ptr.vmem [resolvable:$true] %s13
      %19 = dma.hbm_to_vmem [thread:$0]  %s0, 256, %s14, [#allocation3], 128, 128, 8
    $region5: #{tpu_custom_call.1} parent=1 // pred_fallthru
      _
    // Predicated region
    $region6: #{tpu_custom_call.1} parent=1 // pred_check
      _
    $region7: #{tpu_custom_call.1} parent=1 // pred_check_branch
      %21 = sbr.rel (0) target = $region9
    $region8: #{tpu_custom_call.1} parent=1 // pred_region
      %22 = dma.done [#allocation3], 256
    $region9: #{tpu_custom_call.1} parent=1 // pred_fallthru
      _
    %v23 = vld [vmem:[#allocation2] sm:$0xff]
    %v24 = vld [vmem:[#allocation2 + $0x8] sm:$0xff]
    %v25 = vmul.f32 %v23, %v23
    %v26 = vmul.f32 %v24, %v24
    %27 = vadd.xlane.f32.xlu0 %v25
    %v28 = vpop.xlane.xlu0 %27
    %29 = vadd.xlane.f32.xlu0 %v26
    %v30 = vpop.xlane.xlu0 %29
    %v31 = vadd.f32 %v28, 0.0
    %v32 = vadd.f32 %v30, 0.0
    %v33 = vmul.f32 %v31, 0.03125
    %v34 = vmul.f32 %v32, 0.03125
    %v35 = vadd.f32 %v33, 1e-08
    %v36 = vadd.f32 %v34, 1e-08
    %v37 = vrsqrt.pop %v35
    %v38 = vrsqrt.pop %v36
    %v39 = vmul.f32 %v23, %v37
    %v40 = vmul.f32 %v24, %v38
    %41 = vst [vmem:[#allocation5] sm:$0xff] %v39
    %42 = vst [vmem:[#allocation5 + $0x8] sm:$0xff] %v40
    // Predicated region
    $region10: #{tpu_custom_call.1} parent=1 // pred_check
      _
    $region11: #{tpu_custom_call.1} parent=1 // pred_check_branch
      %44 = sbr.rel (0) target = $region13
    $region12: #{tpu_custom_call.1} parent=1 // pred_region
      %s46 = ssub.s32 256, 256
      %47 = vsyncadd [#allocation4], %s46
      %s48 = sshll.u32 [#allocation5], 4
      %s49 = int_to_ptr.vmem [resolvable:$true] %s48
      %54 = dma.vmem_to_hbm [thread:$0]  %s49, 256, %s1, [#allocation4], 128, 128, 8
    $region13: #{tpu_custom_call.1} parent=1 // pred_fallthru
      _
    // Predicated region
    $region14: #{tpu_custom_call.1} parent=1 // pred_check
      _
    $region15: #{tpu_custom_call.1} parent=1 // pred_check_branch
      %56 = sbr.rel (0) target = $region17
    $region16: #{tpu_custom_call.1} parent=1 // pred_region
      %57 = dma.done [#allocation4], 256
    $region17: #{tpu_custom_call.1} parent=1 // pred_fallthru
      _
    %58 = vsyncpa [#allocation3], 1
    %59 = vsyncpa [#allocation4], 1

</llo_original>
